<compile_context>
chip_gen: v5e
topology: v5e:2x2
jax: 0.10.0
libtpu: 0.0.40
codegen_flags: <defaults>
</compile_context>

<pallas_src>
import jax
import jax.numpy as jnp
import numpy as np
from jax.experimental import pallas as pl
from jax.experimental.pallas import tpu as pltpu

N_TREES_REAL = 100      # n_estimators=100 in the reference module
T_PAD = 128             # trees padded to a lane-exact count (zero-weight padding)
DEPTH = 3               # synthetic tree depth
N_LEAVES = 2 ** DEPTH   # 8


def rf_expert_kernel(x_ref, sel_ref, thr_ref, leaf_ref, out_ref):
    # x: (tb, S*F).  sel: (S*F, DEPTH*T) carries the one-hot feature gather
    # tiled over S and pre-scaled by 1/S, so this single MXU dot computes
    # mean_s(x[:, s, feat_idx[c]]) for every (level, tree) column c.
    feat = jnp.dot(x_ref[...], sel_ref[...],
                   preferred_element_type=jnp.float32)        # (tb, DEPTH*T)
    feat = feat - thr_ref[...]                                # broadcast (1, DEPTH*T) subtract

    T = leaf_ref.shape[1]
    b0 = feat[:, 0 * T:1 * T] > 0.0                           # (tb, T) level-0 bits
    b1 = feat[:, 1 * T:2 * T] > 0.0                           # level-1 bits
    b2 = feat[:, 2 * T:3 * T] > 0.0                           # level-2 bits

    leaf = leaf_ref[...]                                      # (8, T); padded trees are all-zero
    # leaf index = b0 + 2*b1 + 4*b2, evaluated as a balanced select tree
    # (7 selects total; no matmul, no one-hot loop, no float-== hazard).
    s00 = jnp.where(b0, leaf[1:2, :], leaf[0:1, :])
    s01 = jnp.where(b0, leaf[3:4, :], leaf[2:3, :])
    s10 = jnp.where(b0, leaf[5:6, :], leaf[4:5, :])
    s11 = jnp.where(b0, leaf[7:8, :], leaf[6:7, :])
    t0 = jnp.where(b1, s01, s00)
    t1 = jnp.where(b1, s11, s10)
    p = jnp.where(b2, t1, t0)                                 # (tb, T)

    # predict_proba(...)[:, 1] averaged over the 100 real trees (padding adds 0).
    tree_sum = jnp.sum(p, axis=-1) * jnp.float32(1.0 / N_TREES_REAL)   # (tb,)
    out_ref[...] = tree_sum[None, :]                          # lane-dense (1, tb) store


def make_forest_params(n_features, seq_len):
    """Deterministic synthetic forest, level-major & lane-padded.

    Returns:
      sel:     (S*F, DEPTH*T_PAD) — one-hot feature selector tiled over the S
               copies of the feature axis and scaled by 1/S, so the seq-mean is
               folded into the gather matmul.
      thr_row: (1, DEPTH*T_PAD)   — per-(level, tree) thresholds.
      leaf:    (N_LEAVES, T_PAD)  — leaf values; columns >= 100 are zero.
    """
    T = T_PAD
    td = DEPTH * T
    d_idx = np.repeat(np.arange(DEPTH), T)                    # column -> level
    t_idx = np.tile(np.arange(T), DEPTH)                      # column -> tree
    feat_idx = (t_idx * 7 + d_idx * 3 + 3) % n_features       # feature per (level, tree)

    key = jax.random.PRNGKey(42)
    k_thr, k_leaf = jax.random.split(key)
    thr = np.array(jax.random.uniform(k_thr, (td,), jnp.float32, -0.5, 0.5))
    leaf = np.array(jax.random.uniform(k_leaf, (N_LEAVES, T), jnp.float32))
    leaf[:, N_TREES_REAL:] = 0.0                              # padded trees contribute nothing

    sel_f = np.zeros((n_features, td), dtype=np.float32)
    sel_f[feat_idx, np.arange(td)] = 1.0                      # one-hot feature gather
    sel = np.tile(sel_f, (seq_len, 1)) * np.float32(1.0 / seq_len)  # (S*F, td): mean folded in

    return jnp.asarray(sel), jnp.asarray(thr.reshape(1, td)), jnp.asarray(leaf)


def random_forest_expert(x, params, *, tb=None):
    sel, thr_row, leaf = params
    B, S, F = x.shape
    sf = S * F
    assert sel.shape[0] == sf, "forest params were built for a different (S, F)"
    td = sel.shape[1]

    # Free metadata reshape — no concat, no pad, x is read from HBM exactly once.
    x2 = x.reshape(B, sf)
    # NOTE: for very large S*F, add a K grid axis with a VMEM accumulator; at
    # these sizes the whole (S*F, 384) selector stays resident (<1 MiB).

    if tb is None:
        if B <= 128:
            # Single tile: block dims equal the full array dims, so any B works
            # with no padding; the whole batch is one grid step.
            tb = B
        else:
            # Lane-dense tiles, multiple of 128.  Target 2048 rows/tile
            # (2 x 1 MiB double-buffered x — fits every generation's scoped
            # VMEM with big headroom), but shrink until there are >= 2 tiles
            # so the "parallel" axis feeds both TensorCores on v7x.
            tb = 2048
            while tb > 128 and pl.cdiv(B, tb) < 2:
                tb //= 2
    n_tiles = pl.cdiv(B, tb)

    out = pl.pallas_call(
        rf_expert_kernel,
        out_shape=jax.ShapeDtypeStruct((1, n_tiles * tb), jnp.float32),
        grid=(n_tiles,),
        in_specs=[
            pl.BlockSpec((tb, sf), lambda i: (i, 0)),             # lane-dense x tile per step
            pl.BlockSpec((sf, td), lambda i: (0, 0)),             # selector (resident)
            pl.BlockSpec((1, td), lambda i: (0, 0)),              # thresholds (resident)
            pl.BlockSpec((N_LEAVES, T_PAD), lambda i: (0, 0)),    # leaf table (resident)
        ],
        out_specs=pl.BlockSpec((1, tb), lambda i: (0, i)),        # lane-dense output slab
        compiler_params=pltpu.CompilerParams(
            dimension_semantics=("parallel",),                    # shard batch across TCs (v7x)
        ),
    )(x2, sel, thr_row, leaf)

    # Ragged last tile writes unspecified values past B; this slice discards them.
    return out[0, :B][:, None]                                    # (B, 1)


def reference(x, params):
    """Pure-JAX reference for the synthetic forest."""
    sel, thr_row, leaf = params
    B, S, F = x.shape
    T = leaf.shape[1]
    x2 = x.reshape(B, S * F)
    feat = jnp.dot(x2, sel, precision=jax.lax.Precision.HIGHEST) - thr_row
    b0 = (feat[:, :T] > 0).astype(jnp.int32)
    b1 = (feat[:, T:2 * T] > 0).astype(jnp.int32)
    b2 = (feat[:, 2 * T:] > 0).astype(jnp.int32)
    leaf_idx = b0 + 2 * b1 + 4 * b2                               # (B, T) integer leaf index
    onehot = (leaf_idx[:, :, None] ==
              jnp.arange(N_LEAVES)[None, None, :]).astype(jnp.float32)
    p = jnp.sum(onehot * leaf.T[None, :, :], axis=-1)             # (B, T)
    return (jnp.sum(p, axis=1) / N_TREES_REAL)[:, None]


if __name__ == "__main__":
    B, S, F = 4, 8, 16          # batch, seq, features
    key = jax.random.PRNGKey(0)
    x = jax.random.normal(key, (B, S, F), dtype=jnp.float32)

    params = make_forest_params(F, S)

    out = jax.block_until_ready(random_forest_expert(x, params))
    ref = reference(x, params)

    assert out.shape == (B, 1), out.shape
    np.testing.assert_allclose(np.asarray(out), np.asarray(ref), rtol=1e-5, atol=1e-5)

    print("KERNEL_OK")
</pallas_src>

<mosaic_0001>
module attributes {stable_mosaic.version = 11 : i64} {
  func.func @rf_expert_kernel(%arg0: i32, %arg1: memref<4x128xf32, #tpu.memory_space<vmem>>, %arg2: memref<128x384xf32, #tpu.memory_space<vmem>>, %arg3: memref<1x384xf32, #tpu.memory_space<vmem>>, %arg4: memref<8x128xf32, #tpu.memory_space<vmem>>, %arg5: memref<1x4xf32, #tpu.memory_space<vmem>>) attributes {dimension_semantics = [#tpu.dimension_semantics<parallel>], iteration_bounds = array<i64: 1>, scalar_prefetch = 0 : i64, scratch_operands = 0 : i64, tpu.core_type = #tpu.core_type<tc>, window_params = [{transform_indices = @transform_0, window_bounds = array<i64: 4, 128>}, {pipeline_mode = #tpu.pipeline_mode<synchronous>, transform_indices = @transform_1, window_bounds = array<i64: 128, 384>}, {pipeline_mode = #tpu.pipeline_mode<synchronous>, transform_indices = @transform_2, window_bounds = array<i64: 1, 384>}, {pipeline_mode = #tpu.pipeline_mode<synchronous>, transform_indices = @transform_3, window_bounds = array<i64: 8, 128>}, {transform_indices = @transform_4, window_bounds = array<i64: 1, 4>}]} {
    %c0 = arith.constant 0 : index
    %c0_0 = arith.constant 0 : index
    %0 = vector.load %arg1[%c0, %c0_0] : memref<4x128xf32, #tpu.memory_space<vmem>>, vector<4x128xf32>
    %c0_1 = arith.constant 0 : index
    %c0_2 = arith.constant 0 : index
    %1 = vector.load %arg2[%c0_1, %c0_2] : memref<128x384xf32, #tpu.memory_space<vmem>>, vector<128x384xf32>
    %cst = arith.constant dense<0.000000e+00> : vector<4x384xf32>
    %2 = tpu.matmul %0, %1, %cst {dimension_numbers = #tpu.dot_dimension_numbers<[1], [0], [0], [1], [0, 0, 1, 1], [], []>} : vector<4x128xf32>, vector<128x384xf32>, vector<4x384xf32> -> vector<4x384xf32>
    %c0_3 = arith.constant 0 : index
    %c0_4 = arith.constant 0 : index
    %3 = vector.load %arg3[%c0_3, %c0_4] : memref<1x384xf32, #tpu.memory_space<vmem>>, vector<1x384xf32>
    %4 = vector.broadcast %3 : vector<1x384xf32> to vector<4x384xf32>
    %5 = arith.subf %2, %4 : vector<4x384xf32>
    %6 = vector.extract_strided_slice %5 {offsets = [0, 0], sizes = [4, 128], strides = [1, 1]} : vector<4x384xf32> to vector<4x128xf32>
    %cst_5 = arith.constant 0.000000e+00 : f32
    %7 = vector.broadcast %cst_5 : f32 to vector<4x128xf32>
    %8 = arith.cmpf ogt, %6, %7 : vector<4x128xf32>
    %9 = vector.extract_strided_slice %5 {offsets = [0, 128], sizes = [4, 128], strides = [1, 1]} : vector<4x384xf32> to vector<4x128xf32>
    %cst_6 = arith.constant 0.000000e+00 : f32
    %10 = vector.broadcast %cst_6 : f32 to vector<4x128xf32>
    %11 = arith.cmpf ogt, %9, %10 : vector<4x128xf32>
    %12 = vector.extract_strided_slice %5 {offsets = [0, 256], sizes = [4, 128], strides = [1, 1]} : vector<4x384xf32> to vector<4x128xf32>
    %cst_7 = arith.constant 0.000000e+00 : f32
    %13 = vector.broadcast %cst_7 : f32 to vector<4x128xf32>
    %14 = arith.cmpf ogt, %12, %13 : vector<4x128xf32>
    %c0_8 = arith.constant 0 : index
    %c0_9 = arith.constant 0 : index
    %15 = vector.load %arg4[%c0_8, %c0_9] : memref<8x128xf32, #tpu.memory_space<vmem>>, vector<8x128xf32>
    %16 = vector.extract_strided_slice %15 {offsets = [1, 0], sizes = [1, 128], strides = [1, 1]} : vector<8x128xf32> to vector<1x128xf32>
    %17 = vector.extract_strided_slice %15 {offsets = [0, 0], sizes = [1, 128], strides = [1, 1]} : vector<8x128xf32> to vector<1x128xf32>
    %18 = vector.shape_cast %16 : vector<1x128xf32> to vector<1x128xf32>
    %19 = vector.broadcast %18 : vector<1x128xf32> to vector<4x128xf32>
    %20 = vector.shape_cast %17 : vector<1x128xf32> to vector<1x128xf32>
    %21 = vector.broadcast %20 : vector<1x128xf32> to vector<4x128xf32>
    %22 = arith.select %8, %19, %21 : vector<4x128xi1>, vector<4x128xf32>
    %23 = vector.extract_strided_slice %15 {offsets = [3, 0], sizes = [1, 128], strides = [1, 1]} : vector<8x128xf32> to vector<1x128xf32>
    %24 = vector.extract_strided_slice %15 {offsets = [2, 0], sizes = [1, 128], strides = [1, 1]} : vector<8x128xf32> to vector<1x128xf32>
    %25 = vector.shape_cast %23 : vector<1x128xf32> to vector<1x128xf32>
    %26 = vector.broadcast %25 : vector<1x128xf32> to vector<4x128xf32>
    %27 = vector.shape_cast %24 : vector<1x128xf32> to vector<1x128xf32>
    %28 = vector.broadcast %27 : vector<1x128xf32> to vector<4x128xf32>
    %29 = arith.select %8, %26, %28 : vector<4x128xi1>, vector<4x128xf32>
    %30 = vector.extract_strided_slice %15 {offsets = [5, 0], sizes = [1, 128], strides = [1, 1]} : vector<8x128xf32> to vector<1x128xf32>
    %31 = vector.extract_strided_slice %15 {offsets = [4, 0], sizes = [1, 128], strides = [1, 1]} : vector<8x128xf32> to vector<1x128xf32>
    %32 = vector.shape_cast %30 : vector<1x128xf32> to vector<1x128xf32>
    %33 = vector.broadcast %32 : vector<1x128xf32> to vector<4x128xf32>
    %34 = vector.shape_cast %31 : vector<1x128xf32> to vector<1x128xf32>
    %35 = vector.broadcast %34 : vector<1x128xf32> to vector<4x128xf32>
    %36 = arith.select %8, %33, %35 : vector<4x128xi1>, vector<4x128xf32>
    %37 = vector.extract_strided_slice %15 {offsets = [7, 0], sizes = [1, 128], strides = [1, 1]} : vector<8x128xf32> to vector<1x128xf32>
    %38 = vector.extract_strided_slice %15 {offsets = [6, 0], sizes = [1, 128], strides = [1, 1]} : vector<8x128xf32> to vector<1x128xf32>
    %39 = vector.shape_cast %37 : vector<1x128xf32> to vector<1x128xf32>
    %40 = vector.broadcast %39 : vector<1x128xf32> to vector<4x128xf32>
    %41 = vector.shape_cast %38 : vector<1x128xf32> to vector<1x128xf32>
    %42 = vector.broadcast %41 : vector<1x128xf32> to vector<4x128xf32>
    %43 = arith.select %8, %40, %42 : vector<4x128xi1>, vector<4x128xf32>
    %44 = arith.select %11, %29, %22 : vector<4x128xi1>, vector<4x128xf32>
    %45 = arith.select %11, %43, %36 : vector<4x128xi1>, vector<4x128xf32>
    %46 = arith.select %14, %45, %44 : vector<4x128xi1>, vector<4x128xf32>
    %cst_10 = arith.constant dense<0.000000e+00> : vector<4xf32>
    %47 = vector.multi_reduction <add>, %46, %cst_10 [1] : vector<4x128xf32> to vector<4xf32>
    %cst_11 = arith.constant 0.00999999977 : f32
    %48 = vector.broadcast %cst_11 : f32 to vector<4xf32>
    %49 = arith.mulf %47, %48 : vector<4xf32>
    %50 = vector.shape_cast %49 : vector<4xf32> to vector<1x4xf32>
    %c0_12 = arith.constant 0 : index
    %c0_13 = arith.constant 0 : index
    %51 = vector.load %arg5[%c0_12, %c0_13] : memref<1x4xf32, #tpu.memory_space<vmem>>, vector<1x4xf32>
    tpu.vector_store %arg5[%c0_12, %c0_13], %50 {strides = array<i32>} : memref<1x4xf32, #tpu.memory_space<vmem>>, vector<1x4xf32>,
    return
  }
  func.func @transform_0(%arg0: i32) -> (i32, i32) {
    %c0_i32 = arith.constant 0 : i32
    %c0_i32_0 = arith.constant 0 : i32
    return %arg0, %c0_i32 : i32, i32
  }
  func.func @transform_1(%arg0: i32) -> (i32, i32) {
    %c0_i32 = arith.constant 0 : i32
    %c0_i32_0 = arith.constant 0 : i32
    %c0_i32_1 = arith.constant 0 : i32
    return %c0_i32, %c0_i32_0 : i32, i32
  }
  func.func @transform_2(%arg0: i32) -> (i32, i32) {
    %c0_i32 = arith.constant 0 : i32
    %c0_i32_0 = arith.constant 0 : i32
    %c0_i32_1 = arith.constant 0 : i32
    return %c0_i32, %c0_i32_0 : i32, i32
  }
  func.func @transform_3(%arg0: i32) -> (i32, i32) {
    %c0_i32 = arith.constant 0 : i32
    %c0_i32_0 = arith.constant 0 : i32
    %c0_i32_1 = arith.constant 0 : i32
    return %c0_i32, %c0_i32_0 : i32, i32
  }
  func.func @transform_4(%arg0: i32) -> (i32, i32) {
    %c0_i32 = arith.constant 0 : i32
    %c0_i32_0 = arith.constant 0 : i32
    return %c0_i32, %arg0 : i32, i32
  }
}

</mosaic_0001>

<llo_original>
// kernel: tpu_custom_call.1
$region0: #{tpu_custom_call.1}
  #allocation0 [shape = 'u32[]', space=smem, size = 0x4, offset = 0x4, fixed_abs, tag = 'smem constant byte address 0x4 - core index']
  #allocation1 [shape = 'u32[72,128]{1,0:T(1,128)}', space=vmem, size = 0x9000, scoped, tag = 'internal scratch']
  %s0 = inlined_call_operand.hbm [shape: f32[4,128], index: 0, kind: input, shape index: {}]
  %s1 = inlined_call_operand.hbm [shape: f32[128,384], index: 1, kind: input, shape index: {}]
  %s2 = inlined_call_operand.hbm [shape: f32[1,384], index: 2, kind: input, shape index: {}]
  %s3 = inlined_call_operand.hbm [shape: f32[8,128], index: 3, kind: input, shape index: {}]
  %s4 = inlined_call_operand.hbm [shape: f32[1,4], index: 4, kind: output, shape index: {}]
  %s5 = sld [smem:[#allocation0]]
  $region42: #{tpu_custom_call.1} parent=0
    _
  %s7 = ssub.s32 1, %s5
  %s8 = scalar_select 0, %s7, %s5
  $region1: #{tpu_custom_call.1} parent=0
    #allocation2 [shape = 'u8[2048]{0}', space=vmem, size = 0x800, scoped, tag = 'input window, operand 0, single buffered']
    #allocation3 [shape = 's32[1]{0}', space=sflag, size = 0x4, scoped, tag = 'scoped memory for tpu_custom_call.1']
    #allocation4 [shape = 's32[1]{0}', space=sflag, size = 0x4, scoped, tag = 'scoped memory for tpu_custom_call.1']
    #allocation5 [shape = 'u8[196608]{0}', space=vmem, size = 0x30000, scoped, tag = 'input window, operand 1, single buffered']
    #allocation6 [shape = 's32[1]{0}', space=sflag, size = 0x4, scoped, tag = 'scoped memory for tpu_custom_call.1']
    #allocation7 [shape = 'u8[1536]{0}', space=vmem, size = 0x800, scoped, tag = 'input window, operand 2, single buffered']
    #allocation8 [shape = 'u8[4096]{0}', space=vmem, size = 0x1000, scoped, tag = 'input window, operand 3, single buffered']
    #allocation9 [shape = 's32[1]{0}', space=sflag, size = 0x4, scoped, tag = 'scoped memory for tpu_custom_call.1']
    #allocation10 [shape = 'u8[512]{0}', space=vmem, size = 0x400, scoped, tag = 'output window, operand 0, single buffered']
    %9 = vsyncpa [#allocation3], 0
    %10 = vsyncpa [#allocation6], 0
    %11 = vsyncpa [#allocation9], 0
    %12 = vsyncpa [#allocation4], 0
    // Predicated region
    $region2: #{tpu_custom_call.1} parent=1 // pred_check
      _
    $region3: #{tpu_custom_call.1} parent=1 // pred_check_branch
      %14 = sbr.rel (0) target = $region5
    $region4: #{tpu_custom_call.1} parent=1 // pred_region
      %16 = vsyncadd [#allocation3], 0
      %s18 = sshll.u32 %s0, 4
      %s19 = int_to_ptr.hbm [resolvable:$true] %s18
      %s20 = sshll.u32 [#allocation2], 4
      %s21 = int_to_ptr.vmem [resolvable:$true] %s20
      %23 = dma.hbm_to_vmem [thread:$0]  %s19, 64, %s21, [#allocation3]
    $region5: #{tpu_custom_call.1} parent=1 // pred_fallthru
      _
    // Predicated region
    $region6: #{tpu_custom_call.1} parent=1 // pred_check
      _
    $region7: #{tpu_custom_call.1} parent=1 // pred_check_branch
      %25 = sbr.rel (0) target = $region9
    $region8: #{tpu_custom_call.1} parent=1 // pred_region
      %27 = vsyncadd [#allocation6], 0
      %s28 = sshll.u32 %s1, 4
      %s29 = int_to_ptr.hbm [resolvable:$true] %s28
      %s30 = sshll.u32 [#allocation5], 4
      %s31 = int_to_ptr.vmem [resolvable:$true] %s30
      %36 = dma.hbm_to_vmem [thread:$0]  %s29, 6144, %s31, [#allocation6], 384, 384, 24
    $region9: #{tpu_custom_call.1} parent=1 // pred_fallthru
      _
    // Predicated region
    $region10: #{tpu_custom_call.1} parent=1 // pred_check
      _
    $region11: #{tpu_custom_call.1} parent=1 // pred_check_branch
      %38 = sbr.rel (0) target = $region13
    $region12: #{tpu_custom_call.1} parent=1 // pred_region
      %40 = vsyncadd [#allocation6], 0
      %s42 = sshll.u32 %s2, 4
      %s43 = int_to_ptr.hbm [resolvable:$true] %s42
      %s44 = sshll.u32 [#allocation7], 4
      %s45 = int_to_ptr.vmem [resolvable:$true] %s44
      %47 = dma.hbm_to_vmem [thread:$0]  %s43, 48, %s45, [#allocation6]
    $region13: #{tpu_custom_call.1} parent=1 // pred_fallthru
      _
    // Predicated region
    $region14: #{tpu_custom_call.1} parent=1 // pred_check
      _
    $region15: #{tpu_custom_call.1} parent=1 // pred_check_branch
      %49 = sbr.rel (0) target = $region17
    $region16: #{tpu_custom_call.1} parent=1 // pred_region
      %51 = vsyncadd [#allocation9], 0
      %s53 = sshll.u32 %s3, 4
      %s54 = int_to_ptr.hbm [resolvable:$true] %s53
      %s55 = sshll.u32 [#allocation8], 4
      %s56 = int_to_ptr.vmem [resolvable:$true] %s55
      %58 = dma.hbm_to_vmem [thread:$0]  %s54, 128, %s56, [#allocation9]
    $region17: #{tpu_custom_call.1} parent=1 // pred_fallthru
      _
    // Predicated region
    $region18: #{tpu_custom_call.1} parent=1 // pred_check
      _
    $region19: #{tpu_custom_call.1} parent=1 // pred_check_branch
      %60 = sbr.rel (0) target = $region21
    $region20: #{tpu_custom_call.1} parent=1 // pred_region
      %62 = dma.done [#allocation3], 64
    $region21: #{tpu_custom_call.1} parent=1 // pred_fallthru
      _
    // Predicated region
    $region22: #{tpu_custom_call.1} parent=1 // pred_check
      _
    $region23: #{tpu_custom_call.1} parent=1 // pred_check_branch
      %64 = sbr.rel (0) target = $region25
    $region24: #{tpu_custom_call.1} parent=1 // pred_region
      %66 = dma.done [#allocation6], 6144
    $region25: #{tpu_custom_call.1} parent=1 // pred_fallthru
      _
    // Predicated region
    $region26: #{tpu_custom_call.1} parent=1 // pred_check
      _
    $region27: #{tpu_custom_call.1} parent=1 // pred_check_branch
      %68 = sbr.rel (0) target = $region29
    $region28: #{tpu_custom_call.1} parent=1 // pred_region
      %70 = dma.done [#allocation6], 48
    $region29: #{tpu_custom_call.1} parent=1 // pred_fallthru
      _
    // Predicated region
    $region30: #{tpu_custom_call.1} parent=1 // pred_check
      _
    $region31: #{tpu_custom_call.1} parent=1 // pred_check_branch
      %72 = sbr.rel (0) target = $region33
    $region32: #{tpu_custom_call.1} parent=1 // pred_region
      %74 = dma.done [#allocation9], 128
    $region33: #{tpu_custom_call.1} parent=1 // pred_fallthru
      _
    %v75 = vld [vmem:[#allocation2] sm:$0xf]
    %v76 = vld [vmem:[#allocation5] sm:$0xff]
    %v77 = vld [vmem:[#allocation5 + $0x8] sm:$0xff]
    %v78 = vld [vmem:[#allocation5 + $0x10] sm:$0xff]
    %v79 = vld [vmem:[#allocation5 + $0x18] sm:$0xff]
    %v80 = vld [vmem:[#allocation5 + $0x20] sm:$0xff]
    %v81 = vld [vmem:[#allocation5 + $0x28] sm:$0xff]
    %v82 = vld [vmem:[#allocation5 + $0x30] sm:$0xff]
    %v83 = vld [vmem:[#allocation5 + $0x38] sm:$0xff]
    %v84 = vld [vmem:[#allocation5 + $0x40] sm:$0xff]
    %v85 = vld [vmem:[#allocation5 + $0x48] sm:$0xff]
    %v86 = vld [vmem:[#allocation5 + $0x50] sm:$0xff]
    %v87 = vld [vmem:[#allocation5 + $0x58] sm:$0xff]
    %v88 = vld [vmem:[#allocation5 + $0x60] sm:$0xff]
    %v89 = vld [vmem:[#allocation5 + $0x68] sm:$0xff]
    %v90 = vld [vmem:[#allocation5 + $0x70] sm:$0xff]
    %v91 = vld [vmem:[#allocation5 + $0x78] sm:$0xff]
    %v92 = vld [vmem:[#allocation5 + $0x80] sm:$0xff]
    %v93 = vld [vmem:[#allocation5 + $0x88] sm:$0xff]
    %v94 = vld [vmem:[#allocation5 + $0x90] sm:$0xff]
    %v95 = vld [vmem:[#allocation5 + $0x98] sm:$0xff]
    %v96 = vld [vmem:[#allocation5 + $0xa0] sm:$0xff]
    %v97 = vld [vmem:[#allocation5 + $0xa8] sm:$0xff]
    %v98 = vld [vmem:[#allocation5 + $0xb0] sm:$0xff]
    %v99 = vld [vmem:[#allocation5 + $0xb8] sm:$0xff]
    %v100 = vld [vmem:[#allocation5 + $0xc0] sm:$0xff]
    %v101 = vld [vmem:[#allocation5 + $0xc8] sm:$0xff]
    %v102 = vld [vmem:[#allocation5 + $0xd0] sm:$0xff]
    %v103 = vld [vmem:[#allocation5 + $0xd8] sm:$0xff]
    %v104 = vld [vmem:[#allocation5 + $0xe0] sm:$0xff]
    %v105 = vld [vmem:[#allocation5 + $0xe8] sm:$0xff]
    %v106 = vld [vmem:[#allocation5 + $0xf0] sm:$0xff]
    %v107 = vld [vmem:[#allocation5 + $0xf8] sm:$0xff]
    %v108 = vld [vmem:[#allocation5 + $0x100] sm:$0xff]
    %v109 = vld [vmem:[#allocation5 + $0x108] sm:$0xff]
    %v110 = vld [vmem:[#allocation5 + $0x110] sm:$0xff]
    %v111 = vld [vmem:[#allocation5 + $0x118] sm:$0xff]
    %v112 = vld [vmem:[#allocation5 + $0x120] sm:$0xff]
    %v113 = vld [vmem:[#allocation5 + $0x128] sm:$0xff]
    %v114 = vld [vmem:[#allocation5 + $0x130] sm:$0xff]
    %v115 = vld [vmem:[#allocation5 + $0x138] sm:$0xff]
    %v116 = vld [vmem:[#allocation5 + $0x140] sm:$0xff]
    %v117 = vld [vmem:[#allocation5 + $0x148] sm:$0xff]
    %v118 = vld [vmem:[#allocation5 + $0x150] sm:$0xff]
    %v119 = vld [vmem:[#allocation5 + $0x158] sm:$0xff]
    %v120 = vld [vmem:[#allocation5 + $0x160] sm:$0xff]
    %v121 = vld [vmem:[#allocation5 + $0x168] sm:$0xff]
    %v122 = vld [vmem:[#allocation5 + $0x170] sm:$0xff]
    %v123 = vld [vmem:[#allocation5 + $0x178] sm:$0xff]
    %124 = vmatpush.msra.mxu0 %v121
    %125 = vmatpush.msra.mxu0 %v118
    %126 = vmatpush.msra.mxu0 %v115
    %127 = vmatpush.msra.mxu0 %v112
    %128 = vmatpush.msra.mxu0 %v109
    %129 = vmatpush.msra.mxu0 %v106
    %130 = vmatpush.msra.mxu0 %v103
    %131 = vmatpush.msra.mxu0 %v100
    %132 = vmatpush.msra.mxu0 %v97
    %133 = vmatpush.msra.mxu0 %v94
    %134 = vmatpush.msra.mxu0 %v91
    %135 = vmatpush.msra.mxu0 %v88
    %136 = vmatpush.msra.mxu0 %v85
    %137 = vmatpush.msra.mxu0 %v82
    %138 = vmatpush.msra.mxu0 %v79
    %139 = vmatpush.msra.mxu0 %v76
    %140 = vmatmul.f32.gmra.mxu0 %v75
    %v141 = vpop.f32.mrf.mxu0
    %v142 = vadd.f32 0.0, %v141
    %143 = vdwg.mxu0
    %144 = vmatpush.msra.mxu0 %v122
    %145 = vmatpush.msra.mxu0 %v119
    %146 = vmatpush.msra.mxu0 %v116
    %147 = vmatpush.msra.mxu0 %v113
    %148 = vmatpush.msra.mxu0 %v110
    %149 = vmatpush.msra.mxu0 %v107
    %150 = vmatpush.msra.mxu0 %v104
    %151 = vmatpush.msra.mxu0 %v101
    %152 = vmatpush.msra.mxu0 %v98
    %153 = vmatpush.msra.mxu0 %v95
    %154 = vmatpush.msra.mxu0 %v92
    %155 = vmatpush.msra.mxu0 %v89
    %156 = vmatpush.msra.mxu0 %v86
    %157 = vmatpush.msra.mxu0 %v83
    %158 = vmatpush.msra.mxu0 %v80
    %159 = vmatpush.msra.mxu0 %v77
    %160 = vmatmul.f32.gmra.mxu0 %v75
    %v161 = vpop.f32.mrf.mxu0
    %v162 = vadd.f32 0.0, %v161
    %163 = vdwg.mxu0
    %164 = vmatpush.msra.mxu0 %v123
    %165 = vmatpush.msra.mxu0 %v120
    %166 = vmatpush.msra.mxu0 %v117
    %167 = vmatpush.msra.mxu0 %v114
    %168 = vmatpush.msra.mxu0 %v111
    %169 = vmatpush.msra.mxu0 %v108
    %170 = vmatpush.msra.mxu0 %v105
    %171 = vmatpush.msra.mxu0 %v102
    %172 = vmatpush.msra.mxu0 %v99
    %173 = vmatpush.msra.mxu0 %v96
    %174 = vmatpush.msra.mxu0 %v93
    %175 = vmatpush.msra.mxu0 %v90
    %176 = vmatpush.msra.mxu0 %v87
    %177 = vmatpush.msra.mxu0 %v84
    %178 = vmatpush.msra.mxu0 %v81
    %179 = vmatpush.msra.mxu0 %v78
    %180 = vmatmul.f32.gmra.mxu0 %v75
    %v181 = vpop.f32.mrf.mxu0
    %v182 = vadd.f32 0.0, %v181
    %183 = vdwg.mxu0
    %v184 = vld [vmem:[#allocation7] sm:$0x7]
    %v186 = vperm.slane %v184, 0
    %v187 = vperm.slane %v184, 1
    %v188 = vperm.slane %v184, 2
    %v192 = vsub.f32 %v142, %v186
    %v193 = vsub.f32 %v162, %v187
    %v194 = vsub.f32 %v182, %v188
    %vm195 = vcmp.gt.f32.partialorder %v192, 0.0
    %vm196 = vcmp.gt.f32.partialorder %v193, 0.0
    %vm197 = vcmp.gt.f32.partialorder %v194, 0.0
    %v198 = vld [vmem:[#allocation8] sm:$0xff]
    %v199 = vperm.slane %v198, 1
    %v200 = vperm.slane %v198, 0
    %v201 = vsel %vm195, %v199, %v200
    %v202 = vperm.slane %v198, 3
    %v203 = vperm.slane %v198, 2
    %v204 = vsel %vm195, %v202, %v203
    %v205 = vperm.slane %v198, 5
    %v206 = vperm.slane %v198, 4
    %v207 = vsel %vm195, %v205, %v206
    %v208 = vperm.slane %v198, 7
    %v209 = vperm.slane %v198, 6
    %v210 = vsel %vm195, %v208, %v209
    %v211 = vsel %vm196, %v204, %v201
    %v212 = vsel %vm196, %v210, %v207
    %v213 = vsel %vm197, %v212, %v211
    %vm214 = vcmask 1043456
    %v215 = vsel %vm214, %v213, 0.0
    %216 = vadd.xlane.f32.xlu0 %v215
    %v217 = vpop.xlane.xlu0 %216
    %v218 = vmul.f32 %v217, 0.01
    %v220 = vlaneseq
    %v221 = vand.u32 %v220, 127
    %v222 = vperm.slane %v218, %v221
    %vm224 = vcmask 24576
    %225 = vst.msk [vmem:[#allocation10] sm:$0x1] %vm224, %v222
    // Predicated region
    $region34: #{tpu_custom_call.1} parent=1 // pred_check
      _
    $region35: #{tpu_custom_call.1} parent=1 // pred_check_branch
      %227 = sbr.rel (0) target = $region37
    $region36: #{tpu_custom_call.1} parent=1 // pred_region
      %229 = vsyncadd [#allocation4], 0
      %s231 = sshll.u32 [#allocation10], 4
      %s232 = int_to_ptr.vmem [resolvable:$true] %s231
      %s233 = sshll.u32 %s4, 4
      %s234 = int_to_ptr.hbm [resolvable:$true] %s233
      %236 = dma.vmem_to_hbm [thread:$0]  %s232, 16, %s234, [#allocation4]
    $region37: #{tpu_custom_call.1} parent=1 // pred_fallthru
      _
    // Predicated region
    $region38: #{tpu_custom_call.1} parent=1 // pred_check
      _
    $region39: #{tpu_custom_call.1} parent=1 // pred_check_branch
      %238 = sbr.rel (0) target = $region41
    $region40: #{tpu_custom_call.1} parent=1 // pred_region
      %240 = dma.done [#allocation4], 16
    $region41: #{tpu_custom_call.1} parent=1 // pred_fallthru
      _
    %241 = vsyncpa [#allocation3], 1
    %242 = vsyncpa [#allocation6], 1
    %243 = vsyncpa [#allocation9], 1
    %244 = vsyncpa [#allocation4], 1

</llo_original>
